<compile_context>
chip_gen: v5e
topology: v5e:2x2
jax: 0.10.0
libtpu: 0.0.40
codegen_flags: <defaults>
</compile_context>

<pallas_src>
import jax
import jax.numpy as jnp
from jax.experimental import pallas as pl
from jax.experimental.pallas import tpu as pltpu

INPUT_DIM = 2    # env.observation_space.shape[0] for MountainCar-v0
HIDDEN = 64
OUTPUT_DIM = 3   # env.action_space.n for MountainCar-v0


def _round_up(x, m):
    return ((x + m - 1) // m) * m


def policy_net_kernel(x_ref, w1_ref, b1_ref, w2_ref, b2_ref, w3_ref, b3_ref,
                      o_ref):
    # Feature-major: x_ref is (INPUT_DIM, TB), o_ref is (OUTPUT_DIM, TB);
    # the batch lives on the 128-lane axis.
    x = x_ref[...].astype(jnp.float32)                       # (2, TB)

    # fc1 + ReLU: K=2 contraction -> two VPU outer-product FMAs (skip the MXU).
    h1 = (w1_ref[:, 0:1] * x[0:1, :]
          + w1_ref[:, 1:2] * x[1:2, :]
          + b1_ref[...])                                     # (64, TB) f32
    h1 = jnp.maximum(h1, 0.0)

    # Matmul operand dtype comes from the resident weight blocks (bf16 when the
    # wrapper pre-cast them); only the activations are cast per step.
    mm_dtype = w2_ref.dtype

    # fc2 + ReLU: (64, 64) @ (64, TB) on the MXU, f32 accumulation.
    h2 = jnp.dot(w2_ref[...], h1.astype(mm_dtype),
                 preferred_element_type=jnp.float32) + b2_ref[...]
    h2 = jnp.maximum(h2, 0.0)                                # (64, TB)

    # fc3: (3, 64) @ (64, TB) -> lane-dense (3, TB) logits.
    logits = jnp.dot(w3_ref[...], h2.astype(mm_dtype),
                     preferred_element_type=jnp.float32) + b3_ref[...]

    # Softmax over the action axis (3 sublanes). Exact divide so probabilities
    # sum to 1 (approximate reciprocal caused the previous check failure).
    m = jnp.max(logits, axis=0, keepdims=True)               # (1, TB)
    e = jnp.exp(logits - m)                                  # (3, TB)
    denom = jnp.sum(e, axis=0, keepdims=True)                # (1, TB)
    o_ref[...] = (e / denom).astype(o_ref.dtype)


def policy_net_forward(x, params, *, block_b=8192, use_bf16=True):
    """x: (B, INPUT_DIM) float32 -> (B, OUTPUT_DIM) action probabilities."""
    w1, b1, w2, b2, w3, b3 = params
    B = x.shape[0]

    # Batch goes on the lane axis: lane-aligned tile size, balanced across grid.
    num_tiles = pl.cdiv(B, block_b)
    tb = _round_up(pl.cdiv(B, num_tiles), 128)
    b_pad = num_tiles * tb

    xt = x.astype(jnp.float32).T                             # (2, B) feature-major
    if b_pad != B:
        # 8 bytes per padded column -> negligible; padded columns produce
        # finite softmax of bias-only logits and are sliced off below.
        xt = jnp.pad(xt, ((0, 0), (0, b_pad - B)))

    if use_bf16:
        w2 = w2.astype(jnp.bfloat16)
        w3 = w3.astype(jnp.bfloat16)

    tile_map = lambda i: (0, i)    # activation tiles follow the batch grid
    const_map = lambda i: (0, 0)   # weights/biases stay VMEM-resident

    weight_bytes = sum(int(p.size) * p.dtype.itemsize
                       for p in (w1, b1, w2, b2, w3, b3))
    cost = pl.CostEstimate(
        flops=2 * b_pad * (INPUT_DIM * HIDDEN + HIDDEN * HIDDEN
                           + HIDDEN * OUTPUT_DIM),
        transcendentals=OUTPUT_DIM * b_pad,
        bytes_accessed=4 * b_pad * (INPUT_DIM + OUTPUT_DIM) + weight_bytes,
    )

    out = pl.pallas_call(
        policy_net_kernel,
        out_shape=jax.ShapeDtypeStruct((OUTPUT_DIM, b_pad), jnp.float32),
        grid_spec=pltpu.PrefetchScalarGridSpec(
            num_scalar_prefetch=0,
            grid=(num_tiles,),
            in_specs=[
                pl.BlockSpec((INPUT_DIM, tb), tile_map),
                pl.BlockSpec((HIDDEN, INPUT_DIM), const_map),
                pl.BlockSpec((HIDDEN, 1), const_map),
                pl.BlockSpec((HIDDEN, HIDDEN), const_map),
                pl.BlockSpec((HIDDEN, 1), const_map),
                pl.BlockSpec((OUTPUT_DIM, HIDDEN), const_map),
                pl.BlockSpec((OUTPUT_DIM, 1), const_map),
            ],
            out_specs=pl.BlockSpec((OUTPUT_DIM, tb), tile_map),
        ),
        compiler_params=pltpu.CompilerParams(
            dimension_semantics=("parallel",),
            vmem_limit_bytes=32 * 1024 * 1024,
        ),
        cost_estimate=cost,
    )(xt, w1, b1, w2, b2, w3, b3)

    return out[:, :B].T                                      # (B, OUTPUT_DIM)


def init_params(key):
    """Deterministic synthetic init; PyTorch (out, in) weight layout."""
    k1, k2, k3, k4, k5, k6 = jax.random.split(key, 6)
    s1 = 1.0 / jnp.sqrt(INPUT_DIM)
    s2 = 1.0 / jnp.sqrt(HIDDEN)
    w1 = jax.random.uniform(k1, (HIDDEN, INPUT_DIM), jnp.float32, -s1, s1)
    b1 = jax.random.uniform(k4, (HIDDEN, 1), jnp.float32, -s1, s1)
    w2 = jax.random.uniform(k2, (HIDDEN, HIDDEN), jnp.float32, -s2, s2)
    b2 = jax.random.uniform(k5, (HIDDEN, 1), jnp.float32, -s2, s2)
    w3 = jax.random.uniform(k3, (OUTPUT_DIM, HIDDEN), jnp.float32, -s2, s2)
    b3 = jax.random.uniform(k6, (OUTPUT_DIM, 1), jnp.float32, -s2, s2)
    return (w1, b1, w2, b2, w3, b3)


def _reference(x, params):
    w1, b1, w2, b2, w3, b3 = params
    h1 = jnp.maximum(x @ w1.T + b1[:, 0], 0.0)
    h2 = jnp.maximum(h1 @ w2.T + b2[:, 0], 0.0)
    return jax.nn.softmax(h2 @ w3.T + b3[:, 0], axis=-1)


if __name__ == "__main__":
    key = jax.random.PRNGKey(0)
    pkey, xkey1, xkey2 = jax.random.split(key, 3)
    params = init_params(pkey)

    # 1) Small single-tile batch, f32 matmul operands.
    batch = 8
    x = jax.random.normal(xkey1, (batch, INPUT_DIM), jnp.float32)
    out = jax.block_until_ready(policy_net_forward(x, params, use_bf16=False))
    ref = _reference(x, params)
    assert out.shape == (batch, OUTPUT_DIM)
    assert jnp.allclose(jnp.sum(out, axis=-1), 1.0, atol=1e-4)
    assert jnp.allclose(out, ref, atol=1e-2, rtol=1e-2)

    # 2) Ragged multi-tile batch to exercise the grid + padding path.
    batch2 = 300
    x2 = jax.random.normal(xkey2, (batch2, INPUT_DIM), jnp.float32)
    out2 = jax.block_until_ready(
        policy_net_forward(x2, params, block_b=128, use_bf16=False))
    ref2 = _reference(x2, params)
    assert out2.shape == (batch2, OUTPUT_DIM)
    assert jnp.allclose(jnp.sum(out2, axis=-1), 1.0, atol=1e-4)
    assert jnp.allclose(out2, ref2, atol=1e-2, rtol=1e-2)

    # 3) Default bf16 MXU path (v5e/v6e/v7x perf path), looser tolerance.
    out_bf16 = jax.block_until_ready(
        policy_net_forward(x2, params, block_b=128, use_bf16=True))
    assert jnp.allclose(jnp.sum(out_bf16, axis=-1), 1.0, atol=1e-4)
    assert jnp.allclose(out_bf16, ref2, atol=3e-2, rtol=3e-2)

    print("KERNEL_OK")
</pallas_src>

<mosaic_0001>
module attributes {stable_mosaic.version = 11 : i64} {
  func.func @policy_net_kernel(%arg0: i32, %arg1: memref<2x128xf32, #tpu.memory_space<vmem>>, %arg2: memref<64x2xf32, #tpu.memory_space<vmem>>, %arg3: memref<64x1xf32, #tpu.memory_space<vmem>>, %arg4: memref<64x64xf32, #tpu.memory_space<vmem>>, %arg5: memref<64x1xf32, #tpu.memory_space<vmem>>, %arg6: memref<3x64xf32, #tpu.memory_space<vmem>>, %arg7: memref<3x1xf32, #tpu.memory_space<vmem>>, %arg8: memref<3x128xf32, #tpu.memory_space<vmem>>) attributes {dimension_semantics = [#tpu.dimension_semantics<parallel>], iteration_bounds = array<i64: 1>, scalar_prefetch = 0 : i64, scratch_operands = 0 : i64, tpu.core_type = #tpu.core_type<tc>, window_params = [{transform_indices = @transform_0, window_bounds = array<i64: 2, 128>}, {pipeline_mode = #tpu.pipeline_mode<synchronous>, transform_indices = @transform_1, window_bounds = array<i64: 64, 2>}, {pipeline_mode = #tpu.pipeline_mode<synchronous>, transform_indices = @transform_2, window_bounds = array<i64: 64, 1>}, {pipeline_mode = #tpu.pipeline_mode<synchronous>, transform_indices = @transform_3, window_bounds = array<i64: 64, 64>}, {pipeline_mode = #tpu.pipeline_mode<synchronous>, transform_indices = @transform_4, window_bounds = array<i64: 64, 1>}, {pipeline_mode = #tpu.pipeline_mode<synchronous>, transform_indices = @transform_5, window_bounds = array<i64: 3, 64>}, {pipeline_mode = #tpu.pipeline_mode<synchronous>, transform_indices = @transform_6, window_bounds = array<i64: 3, 1>}, {transform_indices = @transform_7, window_bounds = array<i64: 3, 128>}]} {
    %c0 = arith.constant 0 : index
    %c0_0 = arith.constant 0 : index
    %0 = vector.load %arg1[%c0, %c0_0] : memref<2x128xf32, #tpu.memory_space<vmem>>, vector<2x128xf32>
    %c0_1 = arith.constant 0 : index
    %c0_2 = arith.constant 0 : index
    %1 = vector.load %arg2[%c0_1, %c0_2] : memref<64x2xf32, #tpu.memory_space<vmem>>, vector<64x1xf32>
    %2 = vector.extract_strided_slice %0 {offsets = [0, 0], sizes = [1, 128], strides = [1, 1]} : vector<2x128xf32> to vector<1x128xf32>
    %3 = vector.broadcast %1 : vector<64x1xf32> to vector<64x128xf32>
    %4 = vector.broadcast %2 : vector<1x128xf32> to vector<64x128xf32>
    %5 = arith.mulf %3, %4 : vector<64x128xf32>
    %c0_3 = arith.constant 0 : index
    %c1 = arith.constant 1 : index
    %6 = vector.load %arg2[%c0_3, %c1] : memref<64x2xf32, #tpu.memory_space<vmem>>, vector<64x1xf32>
    %7 = vector.extract_strided_slice %0 {offsets = [1, 0], sizes = [1, 128], strides = [1, 1]} : vector<2x128xf32> to vector<1x128xf32>
    %8 = vector.broadcast %6 : vector<64x1xf32> to vector<64x128xf32>
    %9 = vector.broadcast %7 : vector<1x128xf32> to vector<64x128xf32>
    %10 = arith.mulf %8, %9 : vector<64x128xf32>
    %11 = arith.addf %5, %10 : vector<64x128xf32>
    %c0_4 = arith.constant 0 : index
    %c0_5 = arith.constant 0 : index
    %12 = vector.load %arg3[%c0_4, %c0_5] : memref<64x1xf32, #tpu.memory_space<vmem>>, vector<64x1xf32>
    %13 = vector.broadcast %12 : vector<64x1xf32> to vector<64x128xf32>
    %14 = arith.addf %11, %13 : vector<64x128xf32>
    %cst = arith.constant 0.000000e+00 : f32
    %15 = vector.broadcast %cst : f32 to vector<64x128xf32>
    %16 = arith.maximumf %14, %15 : vector<64x128xf32>
    %c0_6 = arith.constant 0 : index
    %c0_7 = arith.constant 0 : index
    %17 = vector.load %arg4[%c0_6, %c0_7] : memref<64x64xf32, #tpu.memory_space<vmem>>, vector<64x64xf32>
    %cst_8 = arith.constant dense<0.000000e+00> : vector<64x128xf32>
    %18 = tpu.matmul %17, %16, %cst_8 {dimension_numbers = #tpu.dot_dimension_numbers<[1], [0], [0], [1], [0, 0, 1, 1], [], []>} : vector<64x64xf32>, vector<64x128xf32>, vector<64x128xf32> -> vector<64x128xf32>
    %c0_9 = arith.constant 0 : index
    %c0_10 = arith.constant 0 : index
    %19 = vector.load %arg5[%c0_9, %c0_10] : memref<64x1xf32, #tpu.memory_space<vmem>>, vector<64x1xf32>
    %20 = vector.broadcast %19 : vector<64x1xf32> to vector<64x128xf32>
    %21 = arith.addf %18, %20 : vector<64x128xf32>
    %cst_11 = arith.constant 0.000000e+00 : f32
    %22 = vector.broadcast %cst_11 : f32 to vector<64x128xf32>
    %23 = arith.maximumf %21, %22 : vector<64x128xf32>
    %c0_12 = arith.constant 0 : index
    %c0_13 = arith.constant 0 : index
    %24 = vector.load %arg6[%c0_12, %c0_13] : memref<3x64xf32, #tpu.memory_space<vmem>>, vector<3x64xf32>
    %cst_14 = arith.constant dense<0.000000e+00> : vector<3x128xf32>
    %25 = tpu.matmul %24, %23, %cst_14 {dimension_numbers = #tpu.dot_dimension_numbers<[1], [0], [0], [1], [0, 0, 1, 1], [], []>} : vector<3x64xf32>, vector<64x128xf32>, vector<3x128xf32> -> vector<3x128xf32>
    %c0_15 = arith.constant 0 : index
    %c0_16 = arith.constant 0 : index
    %26 = vector.load %arg7[%c0_15, %c0_16] : memref<3x1xf32, #tpu.memory_space<vmem>>, vector<3x1xf32>
    %27 = vector.broadcast %26 : vector<3x1xf32> to vector<3x128xf32>
    %28 = arith.addf %25, %27 : vector<3x128xf32>
    %cst_17 = arith.constant dense<0xFF800000> : vector<128xf32>
    %29 = vector.multi_reduction <maximumf>, %28, %cst_17 [0] : vector<3x128xf32> to vector<128xf32>
    %30 = vector.shape_cast %29 : vector<128xf32> to vector<1x128xf32>
    %31 = vector.broadcast %30 : vector<1x128xf32> to vector<3x128xf32>
    %32 = arith.subf %28, %31 : vector<3x128xf32>
    %33 = math.exp %32 : vector<3x128xf32>
    %cst_18 = arith.constant dense<0.000000e+00> : vector<128xf32>
    %34 = vector.multi_reduction <add>, %33, %cst_18 [0] : vector<3x128xf32> to vector<128xf32>
    %35 = vector.shape_cast %34 : vector<128xf32> to vector<1x128xf32>
    %36 = vector.broadcast %35 : vector<1x128xf32> to vector<3x128xf32>
    %37 = arith.divf %33, %36 : vector<3x128xf32>
    %c0_19 = arith.constant 0 : index
    %c0_20 = arith.constant 0 : index
    %38 = vector.load %arg8[%c0_19, %c0_20] : memref<3x128xf32, #tpu.memory_space<vmem>>, vector<3x128xf32>
    tpu.vector_store %arg8[%c0_19, %c0_20], %37 {strides = array<i32>} : memref<3x128xf32, #tpu.memory_space<vmem>>, vector<3x128xf32>,
    return
  }
  func.func @transform_0(%arg0: i32) -> (i32, i32) {
    %c0_i32 = arith.constant 0 : i32
    %c0_i32_0 = arith.constant 0 : i32
    return %c0_i32, %arg0 : i32, i32
  }
  func.func @transform_1(%arg0: i32) -> (i32, i32) {
    %c0_i32 = arith.constant 0 : i32
    %c0_i32_0 = arith.constant 0 : i32
    %c0_i32_1 = arith.constant 0 : i32
    return %c0_i32, %c0_i32_0 : i32, i32
  }
  func.func @transform_2(%arg0: i32) -> (i32, i32) {
    %c0_i32 = arith.constant 0 : i32
    %c0_i32_0 = arith.constant 0 : i32
    %c0_i32_1 = arith.constant 0 : i32
    return %c0_i32, %c0_i32_0 : i32, i32
  }
  func.func @transform_3(%arg0: i32) -> (i32, i32) {
    %c0_i32 = arith.constant 0 : i32
    %c0_i32_0 = arith.constant 0 : i32
    %c0_i32_1 = arith.constant 0 : i32
    return %c0_i32, %c0_i32_0 : i32, i32
  }
  func.func @transform_4(%arg0: i32) -> (i32, i32) {
    %c0_i32 = arith.constant 0 : i32
    %c0_i32_0 = arith.constant 0 : i32
    %c0_i32_1 = arith.constant 0 : i32
    return %c0_i32, %c0_i32_0 : i32, i32
  }
  func.func @transform_5(%arg0: i32) -> (i32, i32) {
    %c0_i32 = arith.constant 0 : i32
    %c0_i32_0 = arith.constant 0 : i32
    %c0_i32_1 = arith.constant 0 : i32
    return %c0_i32, %c0_i32_0 : i32, i32
  }
  func.func @transform_6(%arg0: i32) -> (i32, i32) {
    %c0_i32 = arith.constant 0 : i32
    %c0_i32_0 = arith.constant 0 : i32
    %c0_i32_1 = arith.constant 0 : i32
    return %c0_i32, %c0_i32_0 : i32, i32
  }
  func.func @transform_7(%arg0: i32) -> (i32, i32) {
    %c0_i32 = arith.constant 0 : i32
    %c0_i32_0 = arith.constant 0 : i32
    return %c0_i32, %arg0 : i32, i32
  }
}

</mosaic_0001>

<llo_original>
// kernel: tpu_custom_call.1
$region0: #{tpu_custom_call.1}
  #allocation0 [shape = 'u32[]', space=smem, size = 0x4, offset = 0x4, fixed_abs, tag = 'smem constant byte address 0x4 - core index']
  #allocation1 [shape = 'u32[72,128]{1,0:T(1,128)}', space=vmem, size = 0x9000, scoped, tag = 'internal scratch']
  %s0 = inlined_call_operand.vmem [shape: f32[2,128], index: 0, kind: input, shape index: {}]
  %s1 = inlined_call_operand.vmem [shape: f32[64,2], index: 1, kind: input, shape index: {}]
  %s2 = inlined_call_operand.vmem [shape: f32[64,1], index: 2, kind: input, shape index: {}]
  %s3 = inlined_call_operand.vmem [shape: f32[64,64], index: 3, kind: input, shape index: {}]
  %s4 = inlined_call_operand.vmem [shape: f32[64,1], index: 4, kind: input, shape index: {}]
  %s5 = inlined_call_operand.vmem [shape: f32[3,64], index: 5, kind: input, shape index: {}]
  %s6 = inlined_call_operand.vmem [shape: f32[3,1], index: 6, kind: input, shape index: {}]
  %s7 = inlined_call_operand.hbm [shape: f32[3,128], index: 7, kind: output, shape index: {}]
  %s8 = sld [smem:[#allocation0]]
  $region38: #{tpu_custom_call.1} parent=0
    _
  %s10 = ssub.s32 1, %s8
  %s11 = scalar_select 0, %s10, %s8
  $region1: #{tpu_custom_call.1} parent=0
    #allocation2 [shape = 'u8[2048]{0}', space=vmem, size = 0x800, scoped, tag = 'output window, operand 0, single buffered']
    #allocation3 [shape = 's32[1]{0}', space=sflag, size = 0x4, scoped, tag = 'scoped memory for tpu_custom_call.1']
    %12 = vsyncpa [#allocation3], 0
    // Predicated region
    $region2: #{tpu_custom_call.1} parent=1 // pred_check
      _
    $region3: #{tpu_custom_call.1} parent=1 // pred_check_branch
      %14 = sbr.rel (0) target = $region5
    $region4: #{tpu_custom_call.1} parent=1 // pred_region
      _
    $region5: #{tpu_custom_call.1} parent=1 // pred_fallthru
      _
    // Predicated region
    $region6: #{tpu_custom_call.1} parent=1 // pred_check
      _
    $region7: #{tpu_custom_call.1} parent=1 // pred_check_branch
      %16 = sbr.rel (0) target = $region9
    $region8: #{tpu_custom_call.1} parent=1 // pred_region
      _
    $region9: #{tpu_custom_call.1} parent=1 // pred_fallthru
      _
    // Predicated region
    $region10: #{tpu_custom_call.1} parent=1 // pred_check
      _
    $region11: #{tpu_custom_call.1} parent=1 // pred_check_branch
      %18 = sbr.rel (0) target = $region13
    $region12: #{tpu_custom_call.1} parent=1 // pred_region
      _
    $region13: #{tpu_custom_call.1} parent=1 // pred_fallthru
      _
    // Predicated region
    $region14: #{tpu_custom_call.1} parent=1 // pred_check
      _
    $region15: #{tpu_custom_call.1} parent=1 // pred_check_branch
      %20 = sbr.rel (0) target = $region17
    $region16: #{tpu_custom_call.1} parent=1 // pred_region
      _
    $region17: #{tpu_custom_call.1} parent=1 // pred_fallthru
      _
    // Predicated region
    $region18: #{tpu_custom_call.1} parent=1 // pred_check
      _
    $region19: #{tpu_custom_call.1} parent=1 // pred_check_branch
      %22 = sbr.rel (0) target = $region21
    $region20: #{tpu_custom_call.1} parent=1 // pred_region
      _
    $region21: #{tpu_custom_call.1} parent=1 // pred_fallthru
      _
    // Predicated region
    $region22: #{tpu_custom_call.1} parent=1 // pred_check
      _
    $region23: #{tpu_custom_call.1} parent=1 // pred_check_branch
      %24 = sbr.rel (0) target = $region25
    $region24: #{tpu_custom_call.1} parent=1 // pred_region
      _
    $region25: #{tpu_custom_call.1} parent=1 // pred_fallthru
      _
    // Predicated region
    $region26: #{tpu_custom_call.1} parent=1 // pred_check
      _
    $region27: #{tpu_custom_call.1} parent=1 // pred_check_branch
      %26 = sbr.rel (0) target = $region29
    $region28: #{tpu_custom_call.1} parent=1 // pred_region
      _
    $region29: #{tpu_custom_call.1} parent=1 // pred_fallthru
      _
    %v27 = vld [vmem:[%s0] sm:$0x3]
    %v28 = vld [vmem:[%s1] sm:$0xff]
    %v29 = vld [vmem:[%s1 + $0x8] sm:$0xff]
    %v30 = vld [vmem:[%s1 + $0x10] sm:$0xff]
    %v31 = vld [vmem:[%s1 + $0x18] sm:$0xff]
    %v32 = vld [vmem:[%s1 + $0x20] sm:$0xff]
    %v33 = vld [vmem:[%s1 + $0x28] sm:$0xff]
    %v34 = vld [vmem:[%s1 + $0x30] sm:$0xff]
    %v35 = vld [vmem:[%s1 + $0x38] sm:$0xff]
    %37 = vset.pattern.permute.xlu0 0
    %38 = vperm.xlu0 %37, %v28
    %v39 = vpop.permute.xlu0 %38
    %42 = vset.pattern.permute.xlu0 0
    %43 = vperm.xlu0 %42, %v29
    %v44 = vpop.permute.xlu0 %43
    %47 = vset.pattern.permute.xlu0 0
    %48 = vperm.xlu0 %47, %v30
    %v49 = vpop.permute.xlu0 %48
    %52 = vset.pattern.permute.xlu0 0
    %53 = vperm.xlu0 %52, %v31
    %v54 = vpop.permute.xlu0 %53
    %57 = vset.pattern.permute.xlu0 0
    %58 = vperm.xlu0 %57, %v32
    %v59 = vpop.permute.xlu0 %58
    %62 = vset.pattern.permute.xlu0 0
    %63 = vperm.xlu0 %62, %v33
    %v64 = vpop.permute.xlu0 %63
    %67 = vset.pattern.permute.xlu0 0
    %68 = vperm.xlu0 %67, %v34
    %v69 = vpop.permute.xlu0 %68
    %72 = vset.pattern.permute.xlu0 0
    %73 = vperm.xlu0 %72, %v35
    %v74 = vpop.permute.xlu0 %73
    %v76 = vperm.slane %v27, 0
    %v77 = vmul.f32 %v39, %v76
    %v78 = vmul.f32 %v44, %v76
    %v79 = vmul.f32 %v49, %v76
    %v80 = vmul.f32 %v54, %v76
    %v81 = vmul.f32 %v59, %v76
    %v82 = vmul.f32 %v64, %v76
    %v83 = vmul.f32 %v69, %v76
    %v84 = vmul.f32 %v74, %v76
    %85 = vset.pattern.permute.xlu0 1
    %86 = vperm.xlu0 %85, %v28
    %v87 = vpop.permute.xlu0 %86
    %89 = vset.pattern.permute.xlu0 1
    %90 = vperm.xlu0 %89, %v29
    %v91 = vpop.permute.xlu0 %90
    %93 = vset.pattern.permute.xlu0 1
    %94 = vperm.xlu0 %93, %v30
    %v95 = vpop.permute.xlu0 %94
    %97 = vset.pattern.permute.xlu0 1
    %98 = vperm.xlu0 %97, %v31
    %v99 = vpop.permute.xlu0 %98
    %101 = vset.pattern.permute.xlu0 1
    %102 = vperm.xlu0 %101, %v32
    %v103 = vpop.permute.xlu0 %102
    %105 = vset.pattern.permute.xlu0 1
    %106 = vperm.xlu0 %105, %v33
    %v107 = vpop.permute.xlu0 %106
    %109 = vset.pattern.permute.xlu0 1
    %110 = vperm.xlu0 %109, %v34
    %v111 = vpop.permute.xlu0 %110
    %113 = vset.pattern.permute.xlu0 1
    %114 = vperm.xlu0 %113, %v35
    %v115 = vpop.permute.xlu0 %114
    %v117 = vperm.slane %v27, 1
    %v118 = vmul.f32 %v87, %v117
    %v119 = vmul.f32 %v91, %v117
    %v120 = vmul.f32 %v95, %v117
    %v121 = vmul.f32 %v99, %v117
    %v122 = vmul.f32 %v103, %v117
    %v123 = vmul.f32 %v107, %v117
    %v124 = vmul.f32 %v111, %v117
    %v125 = vmul.f32 %v115, %v117
    %v126 = vadd.f32 %v77, %v118
    %v127 = vadd.f32 %v78, %v119
    %v128 = vadd.f32 %v79, %v120
    %v129 = vadd.f32 %v80, %v121
    %v130 = vadd.f32 %v81, %v122
    %v131 = vadd.f32 %v82, %v123
    %v132 = vadd.f32 %v83, %v124
    %v133 = vadd.f32 %v84, %v125
    %v134 = vld [vmem:[%s2] sm:$0xff]
    %v135 = vld [vmem:[%s2 + $0x8] sm:$0xff]
    %v136 = vld [vmem:[%s2 + $0x10] sm:$0xff]
    %v137 = vld [vmem:[%s2 + $0x18] sm:$0xff]
    %v138 = vld [vmem:[%s2 + $0x20] sm:$0xff]
    %v139 = vld [vmem:[%s2 + $0x28] sm:$0xff]
    %v140 = vld [vmem:[%s2 + $0x30] sm:$0xff]
    %v141 = vld [vmem:[%s2 + $0x38] sm:$0xff]
    %143 = vset.pattern.permute.xlu0 0
    %144 = vperm.xlu0 %143, %v134
    %v145 = vpop.permute.xlu0 %144
    %148 = vset.pattern.permute.xlu0 0
    %149 = vperm.xlu0 %148, %v135
    %v150 = vpop.permute.xlu0 %149
    %153 = vset.pattern.permute.xlu0 0
    %154 = vperm.xlu0 %153, %v136
    %v155 = vpop.permute.xlu0 %154
    %158 = vset.pattern.permute.xlu0 0
    %159 = vperm.xlu0 %158, %v137
    %v160 = vpop.permute.xlu0 %159
    %163 = vset.pattern.permute.xlu0 0
    %164 = vperm.xlu0 %163, %v138
    %v165 = vpop.permute.xlu0 %164
    %168 = vset.pattern.permute.xlu0 0
    %169 = vperm.xlu0 %168, %v139
    %v170 = vpop.permute.xlu0 %169
    %173 = vset.pattern.permute.xlu0 0
    %174 = vperm.xlu0 %173, %v140
    %v175 = vpop.permute.xlu0 %174
    %178 = vset.pattern.permute.xlu0 0
    %179 = vperm.xlu0 %178, %v141
    %v180 = vpop.permute.xlu0 %179
    %v182 = vadd.f32 %v126, %v145
    %v183 = vadd.f32 %v127, %v150
    %v184 = vadd.f32 %v128, %v155
    %v185 = vadd.f32 %v129, %v160
    %v186 = vadd.f32 %v130, %v165
    %v187 = vadd.f32 %v131, %v170
    %v188 = vadd.f32 %v132, %v175
    %v189 = vadd.f32 %v133, %v180
    %v190 = vmax.f32 %v182, 0.0
    %v191 = vmax.f32 %v183, 0.0
    %v192 = vmax.f32 %v184, 0.0
    %v193 = vmax.f32 %v185, 0.0
    %v194 = vmax.f32 %v186, 0.0
    %v195 = vmax.f32 %v187, 0.0
    %v196 = vmax.f32 %v188, 0.0
    %v197 = vmax.f32 %v189, 0.0
    %v198 = vld [vmem:[%s3] sm:$0xff]
    %v199 = vld [vmem:[%s3 + $0x8] sm:$0xff]
    %v200 = vld [vmem:[%s3 + $0x10] sm:$0xff]
    %v201 = vld [vmem:[%s3 + $0x18] sm:$0xff]
    %v202 = vld [vmem:[%s3 + $0x20] sm:$0xff]
    %v203 = vld [vmem:[%s3 + $0x28] sm:$0xff]
    %v204 = vld [vmem:[%s3 + $0x30] sm:$0xff]
    %v205 = vld [vmem:[%s3 + $0x38] sm:$0xff]
    %v206 = vld [vmem:[%s4] sm:$0xff]
    %v207 = vld [vmem:[%s4 + $0x8] sm:$0xff]
    %v208 = vld [vmem:[%s4 + $0x10] sm:$0xff]
    %v209 = vld [vmem:[%s4 + $0x18] sm:$0xff]
    %v210 = vld [vmem:[%s4 + $0x20] sm:$0xff]
    %v211 = vld [vmem:[%s4 + $0x28] sm:$0xff]
    %v212 = vld [vmem:[%s4 + $0x30] sm:$0xff]
    %v213 = vld [vmem:[%s4 + $0x38] sm:$0xff]
    %215 = vset.pattern.permute.xlu0 0
    %216 = vperm.xlu0 %215, %v206
    %v217 = vpop.permute.xlu0 %216
    %220 = vset.pattern.permute.xlu0 0
    %221 = vperm.xlu0 %220, %v207
    %v222 = vpop.permute.xlu0 %221
    %225 = vset.pattern.permute.xlu0 0
    %226 = vperm.xlu0 %225, %v208
    %v227 = vpop.permute.xlu0 %226
    %230 = vset.pattern.permute.xlu0 0
    %231 = vperm.xlu0 %230, %v209
    %v232 = vpop.permute.xlu0 %231
    %235 = vset.pattern.permute.xlu0 0
    %236 = vperm.xlu0 %235, %v210
    %v237 = vpop.permute.xlu0 %236
    %240 = vset.pattern.permute.xlu0 0
    %241 = vperm.xlu0 %240, %v211
    %v242 = vpop.permute.xlu0 %241
    %245 = vset.pattern.permute.xlu0 0
    %246 = vperm.xlu0 %245, %v212
    %v247 = vpop.permute.xlu0 %246
    %250 = vset.pattern.permute.xlu0 0
    %251 = vperm.xlu0 %250, %v213
    %v252 = vpop.permute.xlu0 %251
    %vm254 = vcmask 523264
    %v256 = vsel %vm254, %v198, 0
    %v259 = vsel %vm254, %v199, 0
    %v262 = vsel %vm254, %v200, 0
    %v265 = vsel %vm254, %v201, 0
    %v268 = vsel %vm254, %v202, 0
    %v271 = vsel %vm254, %v203, 0
    %v274 = vsel %vm254, %v204, 0
    %v277 = vsel %vm254, %v205, 0
    %279 = vmatpush.msra.mxu0 0.0
    %280 = vmatpush.msra.mxu0 0.0
    %281 = vmatpush.msra.mxu0 0.0
    %282 = vmatpush.msra.mxu0 0.0
    %283 = vmatpush.msra.mxu0 0.0
    %284 = vmatpush.msra.mxu0 0.0
    %285 = vmatpush.msra.mxu0 0.0
    %286 = vmatpush.msra.mxu0 0.0
    %287 = vmatpush.msra.mxu0 %v197
    %288 = vmatpush.msra.mxu0 %v196
    %289 = vmatpush.msra.mxu0 %v195
    %290 = vmatpush.msra.mxu0 %v194
    %291 = vmatpush.msra.mxu0 %v193
    %292 = vmatpush.msra.mxu0 %v192
    %293 = vmatpush.msra.mxu0 %v191
    %294 = vmatpush.msra.mxu0 %v190
    %295 = vmatmul.f32.gmra.mxu0 %v256
    %v296 = vpop.f32.mrf.mxu0
    %v297 = vadd.f32 %v217, %v296
    %298 = vmatmul.f32.gmra.mxu0 %v259
    %v299 = vpop.f32.mrf.mxu0
    %v300 = vadd.f32 %v222, %v299
    %301 = vmatmul.f32.gmra.mxu0 %v262
    %v302 = vpop.f32.mrf.mxu0
    %v303 = vadd.f32 %v227, %v302
    %304 = vmatmul.f32.gmra.mxu0 %v265
    %v305 = vpop.f32.mrf.mxu0
    %v306 = vadd.f32 %v232, %v305
    %307 = vmatmul.f32.gmra.mxu0 %v268
    %v308 = vpop.f32.mrf.mxu0
    %v309 = vadd.f32 %v237, %v308
    %310 = vmatmul.f32.gmra.mxu0 %v271
    %v311 = vpop.f32.mrf.mxu0
    %v312 = vadd.f32 %v242, %v311
    %313 = vmatmul.f32.gmra.mxu0 %v274
    %v314 = vpop.f32.mrf.mxu0
    %v315 = vadd.f32 %v247, %v314
    %316 = vmatmul.f32.gmra.mxu0 %v277
    %v317 = vpop.f32.mrf.mxu0
    %v318 = vadd.f32 %v252, %v317
    %319 = vdwg.mxu0
    %v320 = vmax.f32 %v297, 0.0
    %v321 = vmax.f32 %v300, 0.0
    %v322 = vmax.f32 %v303, 0.0
    %v323 = vmax.f32 %v306, 0.0
    %v324 = vmax.f32 %v309, 0.0
    %v325 = vmax.f32 %v312, 0.0
    %v326 = vmax.f32 %v315, 0.0
    %v327 = vmax.f32 %v318, 0.0
    %v328 = vld [vmem:[%s5] sm:$0x7]
    %v329 = vld [vmem:[%s6] sm:$0x7]
    %331 = vset.pattern.permute.xlu0 0
    %332 = vperm.xlu0 %331, %v329
    %v333 = vpop.permute.xlu0 %332
    %v336 = vsel %vm254, %v328, 0
    %338 = vmatpush.msra.mxu0 0.0
    %339 = vmatpush.msra.mxu0 0.0
    %340 = vmatpush.msra.mxu0 0.0
    %341 = vmatpush.msra.mxu0 0.0
    %342 = vmatpush.msra.mxu0 0.0
    %343 = vmatpush.msra.mxu0 0.0
    %344 = vmatpush.msra.mxu0 0.0
    %345 = vmatpush.msra.mxu0 0.0
    %346 = vmatpush.msra.mxu0 %v327
    %347 = vmatpush.msra.mxu0 %v326
    %348 = vmatpush.msra.mxu0 %v325
    %349 = vmatpush.msra.mxu0 %v324
    %350 = vmatpush.msra.mxu0 %v323
    %351 = vmatpush.msra.mxu0 %v322
    %352 = vmatpush.msra.mxu0 %v321
    %353 = vmatpush.msra.mxu0 %v320
    %354 = vmatmul.f32.gmra.mxu0 %v336
    %v355 = vpop.f32.mrf.mxu0
    %v356 = vadd.f32 %v333, %v355
    %357 = vdwg.mxu0
    %vm358 = vcmask 1042432
    %v359 = vsel %vm358, %v356, -inf
    %v360 = vrot.slane %v359, 4
    %v361 = vmax.f32 %v359, %v360
    %v362 = vrot.slane %v361, 2
    %v363 = vmax.f32 %v361, %v362
    %v364 = vrot.slane %v363, 1
    %v365 = vmax.f32 %v363, %v364
    %v366 = vsub.f32 %v356, %v365
    %v367 = vmul.f32 %v366, 1.442695
    %v368 = vpow.pop %v367
    %v369 = vsel %vm358, %v368, 0.0
    %v370 = vrot.slane %v369, 4
    %v371 = vadd.f32 %v369, %v370
    %v372 = vrot.slane %v371, 2
    %v373 = vadd.f32 %v371, %v372
    %v374 = vrot.slane %v373, 1
    %v375 = vadd.f32 %v373, %v374
    %v376 = vrcp.pop %v375
    %v377 = vmul.f32 %v375, %v376
    %v378 = vsub.f32 1.0, %v377
    %v379 = vmul.f32 %v376, %v378
    %v380 = vadd.f32 %v376, %v379
    %vm381 = vweird.f32 %v375
    %vm382 = vweird.f32 %v376
    %vm383 = vmor %vm381, %vm382
    %v384 = vsel %vm383, %v376, %v380
    %v385 = vand.u32 2147483647, %v375
    %vm386 = vcmp.eq.f32.partialorder %v385, 8.507059e+37
    %v387 = vand.u32 %v375, 2147483648
    %v388 = vor.u32 1.1754944e-38, %v387
    %v389 = vsel %vm386, %v388, %v384
    %v390 = vmul.f32 %v368, %v389
    %391 = vst [vmem:[#allocation2] sm:$0x7] %v390
    // Predicated region
    $region30: #{tpu_custom_call.1} parent=1 // pred_check
      _
    $region31: #{tpu_custom_call.1} parent=1 // pred_check_branch
      %393 = sbr.rel (0) target = $region33
    $region32: #{tpu_custom_call.1} parent=1 // pred_region
      %395 = vsyncadd [#allocation3], 0
      %s397 = sshll.u32 [#allocation2], 4
      %s398 = int_to_ptr.vmem [resolvable:$true] %s397
      %s399 = sshll.u32 %s7, 4
      %s400 = int_to_ptr.hbm [resolvable:$true] %s399
      %402 = dma.vmem_to_hbm [thread:$0]  %s398, 64, %s400, [#allocation3]
    $region33: #{tpu_custom_call.1} parent=1 // pred_fallthru
      _
    // Predicated region
    $region34: #{tpu_custom_call.1} parent=1 // pred_check
      _
    $region35: #{tpu_custom_call.1} parent=1 // pred_check_branch
      %404 = sbr.rel (0) target = $region37
    $region36: #{tpu_custom_call.1} parent=1 // pred_region
      %406 = dma.done [#allocation3], 64
    $region37: #{tpu_custom_call.1} parent=1 // pred_fallthru
      _
    %407 = vsyncpa [#allocation3], 1

</llo_original>
